<compile_context>
chip_gen: v6e
topology: v6e:2x2x1
jax: 0.10.0
libtpu: 0.0.40
codegen_flags: <defaults>
</compile_context>

<pallas_src>
import functools

import numpy as np
import jax
import jax.numpy as jnp
from jax.experimental import pallas as pl
from jax.experimental.pallas import tpu as pltpu


def _fused_convsode_kernel(x_ref, masks_ref, *refs, n_layers, width,
                           relu_types, eps, conv_dtype):
    """Fused [conv3x3 -> BN(train) -> act] stack, channel-major, lane-dense.

    x_ref:     (C0, M)  with M = N*H*W   (flattened activations)
    masks_ref: (8, M)   border-validity mask per off-center 3x3 tap (f32, 0/1)
    refs:      (w_0, gamma_0, beta_0, ..., w_{L-1}, gamma_{L-1}, beta_{L-1}, o_ref)
               w_i:     (Cout_i, 9*Cin_i)  packed (ky, kx, cin) along axis 1
               gamma_i: (Cout_i, 1), beta_i: (Cout_i, 1)
    o_ref:     (C_last, M)
    """
    o_ref = refs[-1]
    m = x_ref.shape[1]
    pad = width + 1                      # max |tap offset| = W + 1
    inv_m = 1.0 / float(m)

    act = x_ref[...].astype(jnp.float32)     # (C, M), lane-dense
    masks = masks_ref[...]                   # (8, M), loaded once, reused per layer

    for li in range(n_layers):
        w_ref = refs[3 * li]
        gamma = refs[3 * li + 1][...]        # (Cout, 1) f32
        beta = refs[3 * li + 2][...]         # (Cout, 1) f32
        cin = act.shape[0]

        # --- im2col: 9 shifted taps concatenated along the contraction axis.
        zeros = jnp.zeros((cin, pad), jnp.float32)
        padded = jnp.concatenate([zeros, act, zeros], axis=1)  # (Cin, M+2*pad)
        taps = []
        mi = 0
        for dy in (-1, 0, 1):
            for dx in (-1, 0, 1):
                if (dy, dx) == (0, 0):
                    taps.append(act)                 # center tap: no mask needed
                else:
                    off = dy * width + dx
                    tap = padded[:, pad + off:pad + off + m]
                    taps.append(tap * masks[mi:mi + 1, :])  # zero border reads
                    mi += 1
        patches = jnp.concatenate(taps, axis=0).astype(conv_dtype)  # (9*Cin, M)

        # --- one MXU matmul per layer: (Cout, 9*Cin) x (9*Cin, M) -> (Cout, M)
        conv = jnp.dot(w_ref[...], patches,
                       preferred_element_type=jnp.float32)

        # --- BatchNorm2d (training mode): per-channel stats over N*H*W,
        #     biased variance, one-pass sum / sum-of-squares, folded into a
        #     single per-channel scale/shift (all f32).
        s1 = jnp.sum(conv, axis=1, keepdims=True)
        s2 = jnp.sum(conv * conv, axis=1, keepdims=True)
        mean = s1 * inv_m
        var = jnp.maximum(s2 * inv_m - mean * mean, 0.0)
        scale = gamma * jax.lax.rsqrt(var + eps)
        shift = beta - mean * scale
        y = conv * scale + shift

        rt = relu_types[li]
        if rt == 'ReLU':
            y = jnp.maximum(y, 0.0)
        elif rt == 'LeakyReLU':
            y = jnp.where(y >= 0.0, y, 0.01 * y)
        # rt == 'None' -> no activation
        act = y

    o_ref[...] = act.astype(o_ref.dtype)


def _tap_masks(n, h, w):
    """(8, N*H*W) f32 validity mask per off-center 3x3 tap (emulates zero pad)."""
    m = np.arange(n * h * w)
    hh = (m // w) % h
    ww = m % w
    rows = []
    for dy in (-1, 0, 1):
        for dx in (-1, 0, 1):
            if (dy, dx) == (0, 0):
                continue
            valid = (hh + dy >= 0) & (hh + dy < h) & (ww + dx >= 0) & (ww + dx < w)
            rows.append(valid)
    return np.stack(rows).astype(np.float32)


def conv_sode_forward(x_nchw, layers, *, conv_dtype=jnp.bfloat16, eps=1e-5):
    """Run the whole [conv->BN->act] stack in one fused pallas_call.

    x_nchw: (N, C0, H, W); layers: list of (w_mat, gamma, beta, relu_type) with
    w_mat of shape (Cout, 9*Cin) packed as (ky, kx, cin) along axis 1.
    """
    n, c0, h, w = x_nchw.shape
    m = n * h * w                      # best perf when this is a multiple of 128
    c_last = layers[-1][0].shape[0]

    # Layout plumbing (wrapper side): channel-major, lane-dense (C, N*H*W).
    x_flat = jnp.transpose(x_nchw, (1, 0, 2, 3)).reshape(c0, m)
    masks = jnp.asarray(_tap_masks(n, h, w))

    inputs = [x_flat, masks]
    in_specs = [pl.BlockSpec((c0, m), lambda i: (0, 0)),
                pl.BlockSpec((8, m), lambda i: (0, 0))]
    relu_types = []
    for (w_mat, gamma, beta, rt) in layers:
        cout = w_mat.shape[0]
        inputs += [w_mat.astype(conv_dtype),
                   gamma.reshape(cout, 1).astype(jnp.float32),
                   beta.reshape(cout, 1).astype(jnp.float32)]
        in_specs += [pl.BlockSpec(w_mat.shape, lambda i: (0, 0)),
                     pl.BlockSpec((cout, 1), lambda i: (0, 0)),
                     pl.BlockSpec((cout, 1), lambda i: (0, 0))]
        relu_types.append(rt)

    kernel = functools.partial(
        _fused_convsode_kernel, n_layers=len(layers), width=w,
        relu_types=tuple(relu_types), eps=eps, conv_dtype=conv_dtype)

    out_flat = pl.pallas_call(
        kernel,
        out_shape=jax.ShapeDtypeStruct((c_last, m), x_nchw.dtype),
        grid=(1,),
        in_specs=in_specs,
        out_specs=pl.BlockSpec((c_last, m), lambda i: (0, 0)),
        compiler_params=pltpu.CompilerParams(
            dimension_semantics=("arbitrary",),
            vmem_limit_bytes=32 * 1024 * 1024),
    )(*inputs)

    # TODO(synk): for large images, tile H/N with a two-pass sum/sumsq BatchNorm
    # accumulator and a 'parallel' grid axis (v7x megacore); kept as one
    # VMEM-resident block here because BN batch statistics are global and the
    # whole fused stack is only a few hundred KB at these shapes.
    return jnp.transpose(out_flat.reshape(c_last, n, h, w), (1, 0, 2, 3))


class ConvSODEFunc:
    """JAX/Pallas re-implementation of the PyTorch ConvSODEFunc forward pass."""

    def __init__(self, channels, relu_type='ReLU', relu_last=True,
                 kernel_size=3, conv_dtype=jnp.bfloat16,
                 key=jax.random.PRNGKey(0)):
        self.nfe = 0
        layers = len(channels) - 1
        if layers < 1:
            raise ValueError('At least one layer required')
        if relu_type not in ('ReLU', 'LeakyReLU', 'None'):
            raise ValueError('Wrong ReLu type ' + relu_type)
        if kernel_size != 3:
            # The torch module hard-codes padding=1, i.e. "same" only for k=3.
            raise NotImplementedError('kernel_size must be 3 (padding=1)')
        self.conv_dtype = conv_dtype

        self.layers = []
        for ii in range(layers):
            key, sub = jax.random.split(key)
            cin, cout = channels[ii], channels[ii + 1]
            fan_in = cin * kernel_size * kernel_size
            bound = (1.0 / fan_in) ** 0.5
            # Synthetic conv weight, stored pre-packed for the im2col matmul:
            # (Cout, KH*KW*Cin) with axis-1 order (ky, kx, cin).  A PyTorch
            # (Cout, Cin, KH, KW) weight maps via w.permute(0,2,3,1).reshape(Cout,-1).
            w = jax.random.uniform(sub, (cout, kernel_size * kernel_size * cin),
                                   jnp.float32, -bound, bound)
            gamma = jnp.ones((cout,), jnp.float32)   # BN weight init
            beta = jnp.zeros((cout,), jnp.float32)   # BN bias init
            act = relu_type if (ii < layers - 1 or relu_last) else 'None'
            self.layers.append((w, gamma, beta, act))

    def __call__(self, t, x):
        # x: NCHW, matching the PyTorch module interface.
        del t
        # NOTE: the torch forward splits x into (z, v) and immediately
        # concatenates them back -> identity; elided on purpose.
        self.nfe += 1
        return conv_sode_forward(x, self.layers, conv_dtype=self.conv_dtype)


def _reference_forward(x_nchw, layers, eps=1e-5):
    """Pure-JAX (XLA) reference with identical semantics, for verification."""
    h = x_nchw
    for (w_mat, gamma, beta, act) in layers:
        cout = w_mat.shape[0]
        cin = h.shape[1]
        w4 = w_mat.reshape(cout, 3, 3, cin).transpose(0, 3, 1, 2)   # OIHW
        conv = jax.lax.conv_general_dilated(
            h, w4, window_strides=(1, 1), padding=((1, 1), (1, 1)),
            dimension_numbers=('NCHW', 'OIHW', 'NCHW'),
            precision=jax.lax.Precision.HIGHEST)
        mean = conv.mean(axis=(0, 2, 3), keepdims=True)
        var = ((conv - mean) ** 2).mean(axis=(0, 2, 3), keepdims=True)
        y = ((conv - mean) * jax.lax.rsqrt(var + eps)
             * gamma.reshape(1, -1, 1, 1) + beta.reshape(1, -1, 1, 1))
        if act == 'ReLU':
            y = jnp.maximum(y, 0.0)
        elif act == 'LeakyReLU':
            y = jnp.where(y >= 0.0, y, 0.01 * y)
        h = y
    return h


if __name__ == "__main__":
    key = jax.random.PRNGKey(0)
    k_x, k_p, k_p2 = jax.random.split(key, 3)

    channels = [4, 8, 4]                 # even first channel count (z/v split)
    x = jax.random.normal(k_x, (2, 4, 16, 16), jnp.float32)   # NCHW

    # 1) f32-matmul path: verify semantics against a pure-JAX reference.
    model_f32 = ConvSODEFunc(channels, relu_type='ReLU', relu_last=True,
                             conv_dtype=jnp.float32, key=k_p)
    out_f32 = jax.block_until_ready(model_f32(jnp.float32(0.0), x))
    ref = jax.block_until_ready(_reference_forward(x, model_f32.layers))
    assert out_f32.shape == (2, channels[-1], 16, 16)
    max_err = float(jnp.max(jnp.abs(out_f32 - ref)))
    # Loose bound: tolerates MXU default-precision differences while still
    # catching structural errors (wrong taps / masks / BN axes), which are O(1).
    assert max_err < 2e-1, f"kernel deviates from reference: {max_err}"

    # 2) LeakyReLU + relu_last=False path (exercises 'None' on the last layer).
    model_lrelu = ConvSODEFunc([4, 8, 8, 4], relu_type='LeakyReLU',
                               relu_last=False, conv_dtype=jnp.float32, key=k_p2)
    out_lr = jax.block_until_ready(model_lrelu(jnp.float32(0.0), x))
    ref_lr = jax.block_until_ready(_reference_forward(x, model_lrelu.layers))
    max_err_lr = float(jnp.max(jnp.abs(out_lr - ref_lr)))
    assert max_err_lr < 2e-1, f"LeakyReLU path deviates: {max_err_lr}"

    # 3) Default bf16-matmul fast path (v5e/v6e/v7x MXU), f32 BN statistics.
    model = ConvSODEFunc(channels, relu_type='ReLU', relu_last=True, key=k_p)
    out = jax.block_until_ready(model(jnp.float32(0.0), x))
    assert out.shape == (2, channels[-1], 16, 16)
    assert bool(jnp.all(jnp.isfinite(out)))
    print("KERNEL_OK")
</pallas_src>

<mosaic_0001>
module attributes {stable_mosaic.version = 11 : i64} {
  func.func @_fused_convsode_kernel(%arg0: i32, %arg1: memref<4x512xf32, #tpu.memory_space<vmem>>, %arg2: memref<8x512xf32, #tpu.memory_space<vmem>>, %arg3: memref<8x36xf32, #tpu.memory_space<vmem>>, %arg4: memref<8x1xf32, #tpu.memory_space<vmem>>, %arg5: memref<8x1xf32, #tpu.memory_space<vmem>>, %arg6: memref<4x72xf32, #tpu.memory_space<vmem>>, %arg7: memref<4x1xf32, #tpu.memory_space<vmem>>, %arg8: memref<4x1xf32, #tpu.memory_space<vmem>>, %arg9: memref<4x512xf32, #tpu.memory_space<vmem>>) attributes {dimension_semantics = [#tpu.dimension_semantics<arbitrary>], iteration_bounds = array<i64: 1>, scalar_prefetch = 0 : i64, scratch_operands = 0 : i64, tpu.core_type = #tpu.core_type<tc>, window_params = [{pipeline_mode = #tpu.pipeline_mode<synchronous>, transform_indices = @transform_0, window_bounds = array<i64: 4, 512>}, {pipeline_mode = #tpu.pipeline_mode<synchronous>, transform_indices = @transform_1, window_bounds = array<i64: 8, 512>}, {pipeline_mode = #tpu.pipeline_mode<synchronous>, transform_indices = @transform_2, window_bounds = array<i64: 8, 36>}, {pipeline_mode = #tpu.pipeline_mode<synchronous>, transform_indices = @transform_3, window_bounds = array<i64: 8, 1>}, {pipeline_mode = #tpu.pipeline_mode<synchronous>, transform_indices = @transform_4, window_bounds = array<i64: 8, 1>}, {pipeline_mode = #tpu.pipeline_mode<synchronous>, transform_indices = @transform_5, window_bounds = array<i64: 4, 72>}, {pipeline_mode = #tpu.pipeline_mode<synchronous>, transform_indices = @transform_6, window_bounds = array<i64: 4, 1>}, {pipeline_mode = #tpu.pipeline_mode<synchronous>, transform_indices = @transform_7, window_bounds = array<i64: 4, 1>}, {pipeline_mode = #tpu.pipeline_mode<synchronous>, transform_indices = @transform_8, window_bounds = array<i64: 4, 512>}]} {
    %c0 = arith.constant 0 : index
    %c0_0 = arith.constant 0 : index
    %0 = vector.load %arg1[%c0, %c0_0] : memref<4x512xf32, #tpu.memory_space<vmem>>, vector<4x512xf32>
    %c0_1 = arith.constant 0 : index
    %c0_2 = arith.constant 0 : index
    %1 = vector.load %arg2[%c0_1, %c0_2] : memref<8x512xf32, #tpu.memory_space<vmem>>, vector<8x512xf32>
    %c0_3 = arith.constant 0 : index
    %c0_4 = arith.constant 0 : index
    %2 = vector.load %arg4[%c0_3, %c0_4] : memref<8x1xf32, #tpu.memory_space<vmem>>, vector<8x1xf32>
    %c0_5 = arith.constant 0 : index
    %c0_6 = arith.constant 0 : index
    %3 = vector.load %arg5[%c0_5, %c0_6] : memref<8x1xf32, #tpu.memory_space<vmem>>, vector<8x1xf32>
    %cst = arith.constant 0.000000e+00 : f32
    %4 = vector.broadcast %cst : f32 to vector<4x17xf32>
    %5 = tpu.concatenate %4, %0, %4 in 1 : vector<4x17xf32>, vector<4x512xf32>, vector<4x17xf32> -> vector<4x546xf32>
    %6 = vector.extract_strided_slice %5 {offsets = [0, 0], sizes = [4, 512], strides = [1, 1]} : vector<4x546xf32> to vector<4x512xf32>
    %7 = vector.extract_strided_slice %1 {offsets = [0, 0], sizes = [1, 512], strides = [1, 1]} : vector<8x512xf32> to vector<1x512xf32>
    %8 = vector.broadcast %7 : vector<1x512xf32> to vector<4x512xf32>
    %9 = arith.mulf %6, %8 : vector<4x512xf32>
    %10 = vector.extract_strided_slice %5 {offsets = [0, 1], sizes = [4, 512], strides = [1, 1]} : vector<4x546xf32> to vector<4x512xf32>
    %11 = vector.extract_strided_slice %1 {offsets = [1, 0], sizes = [1, 512], strides = [1, 1]} : vector<8x512xf32> to vector<1x512xf32>
    %12 = vector.broadcast %11 : vector<1x512xf32> to vector<4x512xf32>
    %13 = arith.mulf %10, %12 : vector<4x512xf32>
    %14 = vector.extract_strided_slice %5 {offsets = [0, 2], sizes = [4, 512], strides = [1, 1]} : vector<4x546xf32> to vector<4x512xf32>
    %15 = vector.extract_strided_slice %1 {offsets = [2, 0], sizes = [1, 512], strides = [1, 1]} : vector<8x512xf32> to vector<1x512xf32>
    %16 = vector.broadcast %15 : vector<1x512xf32> to vector<4x512xf32>
    %17 = arith.mulf %14, %16 : vector<4x512xf32>
    %18 = vector.extract_strided_slice %5 {offsets = [0, 16], sizes = [4, 512], strides = [1, 1]} : vector<4x546xf32> to vector<4x512xf32>
    %19 = vector.extract_strided_slice %1 {offsets = [3, 0], sizes = [1, 512], strides = [1, 1]} : vector<8x512xf32> to vector<1x512xf32>
    %20 = vector.broadcast %19 : vector<1x512xf32> to vector<4x512xf32>
    %21 = arith.mulf %18, %20 : vector<4x512xf32>
    %22 = vector.extract_strided_slice %5 {offsets = [0, 18], sizes = [4, 512], strides = [1, 1]} : vector<4x546xf32> to vector<4x512xf32>
    %23 = vector.extract_strided_slice %1 {offsets = [4, 0], sizes = [1, 512], strides = [1, 1]} : vector<8x512xf32> to vector<1x512xf32>
    %24 = vector.broadcast %23 : vector<1x512xf32> to vector<4x512xf32>
    %25 = arith.mulf %22, %24 : vector<4x512xf32>
    %26 = vector.extract_strided_slice %5 {offsets = [0, 32], sizes = [4, 512], strides = [1, 1]} : vector<4x546xf32> to vector<4x512xf32>
    %27 = vector.extract_strided_slice %1 {offsets = [5, 0], sizes = [1, 512], strides = [1, 1]} : vector<8x512xf32> to vector<1x512xf32>
    %28 = vector.broadcast %27 : vector<1x512xf32> to vector<4x512xf32>
    %29 = arith.mulf %26, %28 : vector<4x512xf32>
    %30 = vector.extract_strided_slice %5 {offsets = [0, 33], sizes = [4, 512], strides = [1, 1]} : vector<4x546xf32> to vector<4x512xf32>
    %31 = vector.extract_strided_slice %1 {offsets = [6, 0], sizes = [1, 512], strides = [1, 1]} : vector<8x512xf32> to vector<1x512xf32>
    %32 = vector.broadcast %31 : vector<1x512xf32> to vector<4x512xf32>
    %33 = arith.mulf %30, %32 : vector<4x512xf32>
    %34 = vector.extract_strided_slice %5 {offsets = [0, 34], sizes = [4, 512], strides = [1, 1]} : vector<4x546xf32> to vector<4x512xf32>
    %35 = vector.extract_strided_slice %1 {offsets = [7, 0], sizes = [1, 512], strides = [1, 1]} : vector<8x512xf32> to vector<1x512xf32>
    %36 = vector.broadcast %35 : vector<1x512xf32> to vector<4x512xf32>
    %37 = arith.mulf %34, %36 : vector<4x512xf32>
    %38 = tpu.concatenate %9, %13, %17, %21, %0, %25, %29, %33, %37 in 0 : vector<4x512xf32>, vector<4x512xf32>, vector<4x512xf32>, vector<4x512xf32>, vector<4x512xf32>, vector<4x512xf32>, vector<4x512xf32>, vector<4x512xf32>, vector<4x512xf32> -> vector<36x512xf32>
    %c0_7 = arith.constant 0 : index
    %c0_8 = arith.constant 0 : index
    %39 = vector.load %arg3[%c0_7, %c0_8] : memref<8x36xf32, #tpu.memory_space<vmem>>, vector<8x36xf32>
    %cst_9 = arith.constant dense<0.000000e+00> : vector<8x512xf32>
    %40 = tpu.matmul %39, %38, %cst_9 {dimension_numbers = #tpu.dot_dimension_numbers<[1], [0], [0], [1], [0, 0, 1, 1], [], []>} : vector<8x36xf32>, vector<36x512xf32>, vector<8x512xf32> -> vector<8x512xf32>
    %cst_10 = arith.constant dense<0.000000e+00> : vector<8xf32>
    %41 = vector.multi_reduction <add>, %40, %cst_10 [1] : vector<8x512xf32> to vector<8xf32>
    %42 = vector.shape_cast %41 : vector<8xf32> to vector<8x1xf32>
    %43 = arith.mulf %40, %40 : vector<8x512xf32>
    %cst_11 = arith.constant dense<0.000000e+00> : vector<8xf32>
    %44 = vector.multi_reduction <add>, %43, %cst_11 [1] : vector<8x512xf32> to vector<8xf32>
    %45 = vector.shape_cast %44 : vector<8xf32> to vector<8x1xf32>
    %cst_12 = arith.constant 0.001953125 : f32
    %46 = vector.broadcast %cst_12 : f32 to vector<8x1xf32>
    %47 = arith.mulf %42, %46 : vector<8x1xf32>
    %cst_13 = arith.constant 0.001953125 : f32
    %48 = vector.broadcast %cst_13 : f32 to vector<8x1xf32>
    %49 = arith.mulf %45, %48 : vector<8x1xf32>
    %50 = arith.mulf %47, %47 : vector<8x1xf32>
    %51 = arith.subf %49, %50 : vector<8x1xf32>
    %cst_14 = arith.constant 0.000000e+00 : f32
    %52 = vector.broadcast %cst_14 : f32 to vector<8x1xf32>
    %53 = arith.maximumf %51, %52 : vector<8x1xf32>
    %cst_15 = arith.constant 9.99999974E-6 : f32
    %54 = vector.broadcast %cst_15 : f32 to vector<8x1xf32>
    %55 = arith.addf %53, %54 : vector<8x1xf32>
    %56 = math.rsqrt %55 : vector<8x1xf32>
    %57 = arith.mulf %2, %56 : vector<8x1xf32>
    %58 = arith.mulf %47, %57 : vector<8x1xf32>
    %59 = arith.subf %3, %58 : vector<8x1xf32>
    %60 = vector.broadcast %57 : vector<8x1xf32> to vector<8x512xf32>
    %61 = arith.mulf %40, %60 : vector<8x512xf32>
    %62 = vector.broadcast %59 : vector<8x1xf32> to vector<8x512xf32>
    %63 = arith.addf %61, %62 : vector<8x512xf32>
    %cst_16 = arith.constant 0.000000e+00 : f32
    %64 = vector.broadcast %cst_16 : f32 to vector<8x512xf32>
    %65 = arith.maximumf %63, %64 : vector<8x512xf32>
    %c0_17 = arith.constant 0 : index
    %c0_18 = arith.constant 0 : index
    %66 = vector.load %arg7[%c0_17, %c0_18] : memref<4x1xf32, #tpu.memory_space<vmem>>, vector<4x1xf32>
    %c0_19 = arith.constant 0 : index
    %c0_20 = arith.constant 0 : index
    %67 = vector.load %arg8[%c0_19, %c0_20] : memref<4x1xf32, #tpu.memory_space<vmem>>, vector<4x1xf32>
    %cst_21 = arith.constant 0.000000e+00 : f32
    %68 = vector.broadcast %cst_21 : f32 to vector<8x17xf32>
    %69 = tpu.concatenate %68, %65, %68 in 1 : vector<8x17xf32>, vector<8x512xf32>, vector<8x17xf32> -> vector<8x546xf32>
    %70 = vector.extract_strided_slice %69 {offsets = [0, 0], sizes = [8, 512], strides = [1, 1]} : vector<8x546xf32> to vector<8x512xf32>
    %71 = vector.extract_strided_slice %1 {offsets = [0, 0], sizes = [1, 512], strides = [1, 1]} : vector<8x512xf32> to vector<1x512xf32>
    %72 = vector.broadcast %71 : vector<1x512xf32> to vector<8x512xf32>
    %73 = arith.mulf %70, %72 : vector<8x512xf32>
    %74 = vector.extract_strided_slice %69 {offsets = [0, 1], sizes = [8, 512], strides = [1, 1]} : vector<8x546xf32> to vector<8x512xf32>
    %75 = vector.extract_strided_slice %1 {offsets = [1, 0], sizes = [1, 512], strides = [1, 1]} : vector<8x512xf32> to vector<1x512xf32>
    %76 = vector.broadcast %75 : vector<1x512xf32> to vector<8x512xf32>
    %77 = arith.mulf %74, %76 : vector<8x512xf32>
    %78 = vector.extract_strided_slice %69 {offsets = [0, 2], sizes = [8, 512], strides = [1, 1]} : vector<8x546xf32> to vector<8x512xf32>
    %79 = vector.extract_strided_slice %1 {offsets = [2, 0], sizes = [1, 512], strides = [1, 1]} : vector<8x512xf32> to vector<1x512xf32>
    %80 = vector.broadcast %79 : vector<1x512xf32> to vector<8x512xf32>
    %81 = arith.mulf %78, %80 : vector<8x512xf32>
    %82 = vector.extract_strided_slice %69 {offsets = [0, 16], sizes = [8, 512], strides = [1, 1]} : vector<8x546xf32> to vector<8x512xf32>
    %83 = vector.extract_strided_slice %1 {offsets = [3, 0], sizes = [1, 512], strides = [1, 1]} : vector<8x512xf32> to vector<1x512xf32>
    %84 = vector.broadcast %83 : vector<1x512xf32> to vector<8x512xf32>
    %85 = arith.mulf %82, %84 : vector<8x512xf32>
    %86 = vector.extract_strided_slice %69 {offsets = [0, 18], sizes = [8, 512], strides = [1, 1]} : vector<8x546xf32> to vector<8x512xf32>
    %87 = vector.extract_strided_slice %1 {offsets = [4, 0], sizes = [1, 512], strides = [1, 1]} : vector<8x512xf32> to vector<1x512xf32>
    %88 = vector.broadcast %87 : vector<1x512xf32> to vector<8x512xf32>
    %89 = arith.mulf %86, %88 : vector<8x512xf32>
    %90 = vector.extract_strided_slice %69 {offsets = [0, 32], sizes = [8, 512], strides = [1, 1]} : vector<8x546xf32> to vector<8x512xf32>
    %91 = vector.extract_strided_slice %1 {offsets = [5, 0], sizes = [1, 512], strides = [1, 1]} : vector<8x512xf32> to vector<1x512xf32>
    %92 = vector.broadcast %91 : vector<1x512xf32> to vector<8x512xf32>
    %93 = arith.mulf %90, %92 : vector<8x512xf32>
    %94 = vector.extract_strided_slice %69 {offsets = [0, 33], sizes = [8, 512], strides = [1, 1]} : vector<8x546xf32> to vector<8x512xf32>
    %95 = vector.extract_strided_slice %1 {offsets = [6, 0], sizes = [1, 512], strides = [1, 1]} : vector<8x512xf32> to vector<1x512xf32>
    %96 = vector.broadcast %95 : vector<1x512xf32> to vector<8x512xf32>
    %97 = arith.mulf %94, %96 : vector<8x512xf32>
    %98 = vector.extract_strided_slice %69 {offsets = [0, 34], sizes = [8, 512], strides = [1, 1]} : vector<8x546xf32> to vector<8x512xf32>
    %99 = vector.extract_strided_slice %1 {offsets = [7, 0], sizes = [1, 512], strides = [1, 1]} : vector<8x512xf32> to vector<1x512xf32>
    %100 = vector.broadcast %99 : vector<1x512xf32> to vector<8x512xf32>
    %101 = arith.mulf %98, %100 : vector<8x512xf32>
    %102 = tpu.concatenate %73, %77, %81, %85, %65, %89, %93, %97, %101 in 0 : vector<8x512xf32>, vector<8x512xf32>, vector<8x512xf32>, vector<8x512xf32>, vector<8x512xf32>, vector<8x512xf32>, vector<8x512xf32>, vector<8x512xf32>, vector<8x512xf32> -> vector<72x512xf32>
    %c0_22 = arith.constant 0 : index
    %c0_23 = arith.constant 0 : index
    %103 = vector.load %arg6[%c0_22, %c0_23] : memref<4x72xf32, #tpu.memory_space<vmem>>, vector<4x72xf32>
    %cst_24 = arith.constant dense<0.000000e+00> : vector<4x512xf32>
    %104 = tpu.matmul %103, %102, %cst_24 {dimension_numbers = #tpu.dot_dimension_numbers<[1], [0], [0], [1], [0, 0, 1, 1], [], []>} : vector<4x72xf32>, vector<72x512xf32>, vector<4x512xf32> -> vector<4x512xf32>
    %cst_25 = arith.constant dense<0.000000e+00> : vector<4xf32>
    %105 = vector.multi_reduction <add>, %104, %cst_25 [1] : vector<4x512xf32> to vector<4xf32>
    %106 = vector.shape_cast %105 : vector<4xf32> to vector<4x1xf32>
    %107 = arith.mulf %104, %104 : vector<4x512xf32>
    %cst_26 = arith.constant dense<0.000000e+00> : vector<4xf32>
    %108 = vector.multi_reduction <add>, %107, %cst_26 [1] : vector<4x512xf32> to vector<4xf32>
    %109 = vector.shape_cast %108 : vector<4xf32> to vector<4x1xf32>
    %cst_27 = arith.constant 0.001953125 : f32
    %110 = vector.broadcast %cst_27 : f32 to vector<4x1xf32>
    %111 = arith.mulf %106, %110 : vector<4x1xf32>
    %cst_28 = arith.constant 0.001953125 : f32
    %112 = vector.broadcast %cst_28 : f32 to vector<4x1xf32>
    %113 = arith.mulf %109, %112 : vector<4x1xf32>
    %114 = arith.mulf %111, %111 : vector<4x1xf32>
    %115 = arith.subf %113, %114 : vector<4x1xf32>
    %cst_29 = arith.constant 0.000000e+00 : f32
    %116 = vector.broadcast %cst_29 : f32 to vector<4x1xf32>
    %117 = arith.maximumf %115, %116 : vector<4x1xf32>
    %cst_30 = arith.constant 9.99999974E-6 : f32
    %118 = vector.broadcast %cst_30 : f32 to vector<4x1xf32>
    %119 = arith.addf %117, %118 : vector<4x1xf32>
    %120 = math.rsqrt %119 : vector<4x1xf32>
    %121 = arith.mulf %66, %120 : vector<4x1xf32>
    %122 = arith.mulf %111, %121 : vector<4x1xf32>
    %123 = arith.subf %67, %122 : vector<4x1xf32>
    %124 = vector.broadcast %121 : vector<4x1xf32> to vector<4x512xf32>
    %125 = arith.mulf %104, %124 : vector<4x512xf32>
    %126 = vector.broadcast %123 : vector<4x1xf32> to vector<4x512xf32>
    %127 = arith.addf %125, %126 : vector<4x512xf32>
    %cst_31 = arith.constant 0.000000e+00 : f32
    %128 = vector.broadcast %cst_31 : f32 to vector<4x512xf32>
    %129 = arith.maximumf %127, %128 : vector<4x512xf32>
    %c0_32 = arith.constant 0 : index
    %c0_33 = arith.constant 0 : index
    %130 = vector.load %arg9[%c0_32, %c0_33] : memref<4x512xf32, #tpu.memory_space<vmem>>, vector<4x512xf32>
    tpu.vector_store %arg9[%c0_32, %c0_33], %129 {strides = array<i32>} : memref<4x512xf32, #tpu.memory_space<vmem>>, vector<4x512xf32>,
    return
  }
  func.func @transform_0(%arg0: i32) -> (i32, i32) {
    %c0_i32 = arith.constant 0 : i32
    %c0_i32_0 = arith.constant 0 : i32
    %c0_i32_1 = arith.constant 0 : i32
    return %c0_i32, %c0_i32_0 : i32, i32
  }
  func.func @transform_1(%arg0: i32) -> (i32, i32) {
    %c0_i32 = arith.constant 0 : i32
    %c0_i32_0 = arith.constant 0 : i32
    %c0_i32_1 = arith.constant 0 : i32
    return %c0_i32, %c0_i32_0 : i32, i32
  }
  func.func @transform_2(%arg0: i32) -> (i32, i32) {
    %c0_i32 = arith.constant 0 : i32
    %c0_i32_0 = arith.constant 0 : i32
    %c0_i32_1 = arith.constant 0 : i32
    return %c0_i32, %c0_i32_0 : i32, i32
  }
  func.func @transform_3(%arg0: i32) -> (i32, i32) {
    %c0_i32 = arith.constant 0 : i32
    %c0_i32_0 = arith.constant 0 : i32
    %c0_i32_1 = arith.constant 0 : i32
    return %c0_i32, %c0_i32_0 : i32, i32
  }
  func.func @transform_4(%arg0: i32) -> (i32, i32) {
    %c0_i32 = arith.constant 0 : i32
    %c0_i32_0 = arith.constant 0 : i32
    %c0_i32_1 = arith.constant 0 : i32
    return %c0_i32, %c0_i32_0 : i32, i32
  }
  func.func @transform_5(%arg0: i32) -> (i32, i32) {
    %c0_i32 = arith.constant 0 : i32
    %c0_i32_0 = arith.constant 0 : i32
    %c0_i32_1 = arith.constant 0 : i32
    return %c0_i32, %c0_i32_0 : i32, i32
  }
  func.func @transform_6(%arg0: i32) -> (i32, i32) {
    %c0_i32 = arith.constant 0 : i32
    %c0_i32_0 = arith.constant 0 : i32
    %c0_i32_1 = arith.constant 0 : i32
    return %c0_i32, %c0_i32_0 : i32, i32
  }
  func.func @transform_7(%arg0: i32) -> (i32, i32) {
    %c0_i32 = arith.constant 0 : i32
    %c0_i32_0 = arith.constant 0 : i32
    %c0_i32_1 = arith.constant 0 : i32
    return %c0_i32, %c0_i32_0 : i32, i32
  }
  func.func @transform_8(%arg0: i32) -> (i32, i32) {
    %c0_i32 = arith.constant 0 : i32
    %c0_i32_0 = arith.constant 0 : i32
    %c0_i32_1 = arith.constant 0 : i32
    return %c0_i32, %c0_i32_0 : i32, i32
  }
}

</mosaic_0001>

<llo_original>
// kernel: tpu_custom_call.1
$region0: #{tpu_custom_call.1}
  #allocation0 [shape = 'u32[]', space=smem, size = 0x4, offset = 0x4, fixed_abs, tag = 'smem constant byte address 0x4 - core index']
  #allocation1 [shape = 'u32[144,128]{1,0:T(1,128)}', space=vmem, size = 0x12000, scoped, tag = 'internal scratch']
  %s0 = inlined_call_operand.vmem [shape: f32[4,512], index: 0, kind: input, shape index: {}]
  %s1 = inlined_call_operand.hbm [shape: f32[8,512], index: 1, kind: input, shape index: {}]
  %s2 = inlined_call_operand.vmem [shape: f32[8,36], index: 2, kind: input, shape index: {}]
  %s3 = inlined_call_operand.vmem [shape: f32[8,1], index: 3, kind: input, shape index: {}]
  %s4 = inlined_call_operand.vmem [shape: f32[8,1], index: 4, kind: input, shape index: {}]
  %s5 = inlined_call_operand.vmem [shape: f32[4,72], index: 5, kind: input, shape index: {}]
  %s6 = inlined_call_operand.vmem [shape: f32[4,1], index: 6, kind: input, shape index: {}]
  %s7 = inlined_call_operand.vmem [shape: f32[4,1], index: 7, kind: input, shape index: {}]
  %s8 = inlined_call_operand.hbm [shape: f32[4,512], index: 8, kind: output, shape index: {}]
  %s9 = sld [smem:[#allocation0]]
  $region46: #{tpu_custom_call.1} parent=0
    _
  %s11 = ssub.s32 1, %s9
  %s12 = scalar_select 0, %s11, %s9
  $region1: #{tpu_custom_call.1} parent=0
    #allocation2 [shape = 'u8[16384]{0}', space=vmem, size = 0x4000, scoped, tag = 'input window, operand 1, single buffered']
    #allocation3 [shape = 's32[1]{0}', space=sflag, size = 0x4, scoped, tag = 'scoped memory for tpu_custom_call.1']
    #allocation4 [shape = 's32[1]{0}', space=sflag, size = 0x4, scoped, tag = 'scoped memory for tpu_custom_call.1']
    #allocation5 [shape = 'u8[8192]{0}', space=vmem, size = 0x2000, scoped, tag = 'output window, operand 0, single buffered']
    %13 = vsyncpa [#allocation3], 0
    %14 = vsyncpa [#allocation4], 0
    // Predicated region
    $region2: #{tpu_custom_call.1} parent=1 // pred_check
      _
    $region3: #{tpu_custom_call.1} parent=1 // pred_check_branch
      %16 = sbr.rel (0) target = $region5
    $region4: #{tpu_custom_call.1} parent=1 // pred_region
      _
    $region5: #{tpu_custom_call.1} parent=1 // pred_fallthru
      _
    // Predicated region
    $region6: #{tpu_custom_call.1} parent=1 // pred_check
      _
    $region7: #{tpu_custom_call.1} parent=1 // pred_check_branch
      %18 = sbr.rel (0) target = $region9
    $region8: #{tpu_custom_call.1} parent=1 // pred_region
      %s20 = ssub.s32 512, 512
      %21 = vsyncadd [#allocation3], %s20
      %s23 = sshll.u32 [#allocation2], 4
      %s24 = int_to_ptr.vmem [resolvable:$true] %s23
      %26 = dma.hbm_to_vmem [thread:$0]  %s1, 512, %s24, [#allocation3]
    $region9: #{tpu_custom_call.1} parent=1 // pred_fallthru
      _
    // Predicated region
    $region10: #{tpu_custom_call.1} parent=1 // pred_check
      _
    $region11: #{tpu_custom_call.1} parent=1 // pred_check_branch
      %28 = sbr.rel (0) target = $region13
    $region12: #{tpu_custom_call.1} parent=1 // pred_region
      _
    $region13: #{tpu_custom_call.1} parent=1 // pred_fallthru
      _
    // Predicated region
    $region14: #{tpu_custom_call.1} parent=1 // pred_check
      _
    $region15: #{tpu_custom_call.1} parent=1 // pred_check_branch
      %30 = sbr.rel (0) target = $region17
    $region16: #{tpu_custom_call.1} parent=1 // pred_region
      _
    $region17: #{tpu_custom_call.1} parent=1 // pred_fallthru
      _
    // Predicated region
    $region18: #{tpu_custom_call.1} parent=1 // pred_check
      _
    $region19: #{tpu_custom_call.1} parent=1 // pred_check_branch
      %32 = sbr.rel (0) target = $region21
    $region20: #{tpu_custom_call.1} parent=1 // pred_region
      _
    $region21: #{tpu_custom_call.1} parent=1 // pred_fallthru
      _
    // Predicated region
    $region22: #{tpu_custom_call.1} parent=1 // pred_check
      _
    $region23: #{tpu_custom_call.1} parent=1 // pred_check_branch
      %34 = sbr.rel (0) target = $region25
    $region24: #{tpu_custom_call.1} parent=1 // pred_region
      _
    $region25: #{tpu_custom_call.1} parent=1 // pred_fallthru
      _
    // Predicated region
    $region26: #{tpu_custom_call.1} parent=1 // pred_check
      _
    $region27: #{tpu_custom_call.1} parent=1 // pred_check_branch
      %36 = sbr.rel (0) target = $region29
    $region28: #{tpu_custom_call.1} parent=1 // pred_region
      _
    $region29: #{tpu_custom_call.1} parent=1 // pred_fallthru
      _
    // Predicated region
    $region30: #{tpu_custom_call.1} parent=1 // pred_check
      _
    $region31: #{tpu_custom_call.1} parent=1 // pred_check_branch
      %38 = sbr.rel (0) target = $region33
    $region32: #{tpu_custom_call.1} parent=1 // pred_region
      _
    $region33: #{tpu_custom_call.1} parent=1 // pred_fallthru
      _
    // Predicated region
    $region34: #{tpu_custom_call.1} parent=1 // pred_check
      _
    $region35: #{tpu_custom_call.1} parent=1 // pred_check_branch
      %40 = sbr.rel (0) target = $region37
    $region36: #{tpu_custom_call.1} parent=1 // pred_region
      %41 = dma.done [#allocation3], 512
    $region37: #{tpu_custom_call.1} parent=1 // pred_fallthru
      _
    %v42 = vld [vmem:[%s0] sm:$0xff]
    %v43 = vld [vmem:[%s0 + $0x8] sm:$0xff]
    %v44 = vld [vmem:[#allocation2] sm:$0xff]
    %v45 = vld [vmem:[#allocation2 + $0x8] sm:$0xff]
    %v46 = vld [vmem:[#allocation2 + $0x10] sm:$0xff]
    %v47 = vld [vmem:[#allocation2 + $0x18] sm:$0xff]
    %v48 = vld [vmem:[%s3] sm:$0xff]
    %v49 = vld [vmem:[%s4] sm:$0xff]
    %v52 = vcombine.high %v42, %v42
    %v53 = vcombine.high %v43, %v43
    %54 = vrot.lane.b32.xlu0 %v42, 17
    %v55 = vpop.permute.xlu0 %54
    %56 = vrot.lane.b32.xlu0 %v52, 17
    %v57 = vpop.permute.xlu0 %56
    %58 = vrot.lane.b32.xlu0 %v43, 17
    %v59 = vpop.permute.xlu0 %58
    %60 = vrot.lane.b32.xlu0 %v53, 17
    %v61 = vpop.permute.xlu0 %60
    %vm62 = vcmask 138240
    %v63 = vsel %vm62, %v55, %v57
    %v64 = vsel %vm62, %v57, %v59
    %v65 = vsel %vm62, %v59, %v61
    %v71 = vsel %vm62, 0.0, %v55
    %v72 = vsel %vm62, %v61, 0.0
    %v73 = vlaneseq
    %v74 = vshrl.u32 %v73, 7
    %v75 = vsub.s32 0, %v74
    %v76 = vrot.slane %v44, %v75
    %v77 = vlaneseq
    %v78 = vshrl.u32 %v77, 7
    %v79 = vsub.s32 0, %v78
    %v80 = vrot.slane %v45, %v79
    %v81 = vlaneseq
    %v82 = vshrl.u32 %v81, 7
    %v83 = vsub.s32 0, %v82
    %v84 = vrot.slane %v46, %v83
    %v85 = vlaneseq
    %v86 = vshrl.u32 %v85, 7
    %v87 = vsub.s32 0, %v86
    %v88 = vrot.slane %v47, %v87
    %v89 = vmul.f32 %v71, %v76
    %v90 = vmul.f32 %v63, %v80
    %v91 = vmul.f32 %v64, %v84
    %v92 = vmul.f32 %v65, %v88
    %v93 = vlaneseq
    %v94 = vshrl.u32 %v93, 7
    %v95 = vsub.s32 1, %v94
    %v96 = vrot.slane %v44, %v95
    %v97 = vlaneseq
    %v98 = vshrl.u32 %v97, 7
    %v99 = vsub.s32 1, %v98
    %v100 = vrot.slane %v45, %v99
    %v101 = vlaneseq
    %v102 = vshrl.u32 %v101, 7
    %v103 = vsub.s32 1, %v102
    %v104 = vrot.slane %v46, %v103
    %v105 = vlaneseq
    %v106 = vshrl.u32 %v105, 7
    %v107 = vsub.s32 1, %v106
    %v108 = vrot.slane %v47, %v107
    %113 = vrot.lane.b32.xlu0 %v96, 1
    %v114 = vpop.permute.xlu0 %113
    %115 = vrot.lane.b32.xlu0 %v100, 1
    %v116 = vpop.permute.xlu0 %115
    %117 = vrot.lane.b32.xlu0 %v104, 1
    %v118 = vpop.permute.xlu0 %117
    %119 = vrot.lane.b32.xlu0 %v108, 1
    %v120 = vpop.permute.xlu0 %119
    %vm121 = vcmask 7168
    %v122 = vsel %vm121, %v114, %v116
    %v123 = vsel %vm121, %v116, %v118
    %v124 = vsel %vm121, %v118, %v120
    %v130 = vmul.f32 %v71, %v114
    %v131 = vmul.f32 %v63, %v122
    %v132 = vmul.f32 %v64, %v123
    %v133 = vmul.f32 %v65, %v124
    %v134 = vmul.f32 %v72, %v120
    %v135 = vlaneseq
    %v136 = vshrl.u32 %v135, 7
    %v137 = vsub.s32 2, %v136
    %v138 = vrot.slane %v44, %v137
    %v139 = vlaneseq
    %v140 = vshrl.u32 %v139, 7
    %v141 = vsub.s32 2, %v140
    %v142 = vrot.slane %v45, %v141
    %v143 = vlaneseq
    %v144 = vshrl.u32 %v143, 7
    %v145 = vsub.s32 2, %v144
    %v146 = vrot.slane %v46, %v145
    %v147 = vlaneseq
    %v148 = vshrl.u32 %v147, 7
    %v149 = vsub.s32 2, %v148
    %v150 = vrot.slane %v47, %v149
    %155 = vrot.lane.b32.xlu0 %v138, 2
    %v156 = vpop.permute.xlu0 %155
    %157 = vrot.lane.b32.xlu0 %v142, 2
    %v158 = vpop.permute.xlu0 %157
    %159 = vrot.lane.b32.xlu0 %v146, 2
    %v160 = vpop.permute.xlu0 %159
    %161 = vrot.lane.b32.xlu0 %v150, 2
    %v162 = vpop.permute.xlu0 %161
    %vm163 = vcmask 15360
    %v164 = vsel %vm163, %v156, %v158
    %v165 = vsel %vm163, %v158, %v160
    %v166 = vsel %vm163, %v160, %v162
    %v172 = vmul.f32 %v71, %v156
    %v173 = vmul.f32 %v63, %v164
    %v174 = vmul.f32 %v64, %v165
    %v175 = vmul.f32 %v65, %v166
    %v176 = vmul.f32 %v72, %v162
    %v177 = vlaneseq
    %v178 = vshrl.u32 %v177, 7
    %v179 = vsub.s32 3, %v178
    %v180 = vrot.slane %v44, %v179
    %v181 = vlaneseq
    %v182 = vshrl.u32 %v181, 7
    %v183 = vsub.s32 3, %v182
    %v184 = vrot.slane %v45, %v183
    %v185 = vlaneseq
    %v186 = vshrl.u32 %v185, 7
    %v187 = vsub.s32 3, %v186
    %v188 = vrot.slane %v46, %v187
    %v189 = vlaneseq
    %v190 = vshrl.u32 %v189, 7
    %v191 = vsub.s32 3, %v190
    %v192 = vrot.slane %v47, %v191
    %197 = vrot.lane.b32.xlu0 %v180, 16
    %v198 = vpop.permute.xlu0 %197
    %199 = vrot.lane.b32.xlu0 %v184, 16
    %v200 = vpop.permute.xlu0 %199
    %201 = vrot.lane.b32.xlu0 %v188, 16
    %v202 = vpop.permute.xlu0 %201
    %203 = vrot.lane.b32.xlu0 %v192, 16
    %v204 = vpop.permute.xlu0 %203
    %vm205 = vcmask 130048
    %v206 = vsel %vm205, %v198, %v200
    %v207 = vsel %vm205, %v200, %v202
    %v208 = vsel %vm205, %v202, %v204
    %v214 = vmul.f32 %v71, %v198
    %v215 = vmul.f32 %v63, %v206
    %v216 = vmul.f32 %v64, %v207
    %v217 = vmul.f32 %v65, %v208
    %v218 = vmul.f32 %v72, %v204
    %v219 = vlaneseq
    %v220 = vshrl.u32 %v219, 7
    %v221 = vsub.s32 4, %v220
    %v222 = vrot.slane %v44, %v221
    %v223 = vlaneseq
    %v224 = vshrl.u32 %v223, 7
    %v225 = vsub.s32 4, %v224
    %v226 = vrot.slane %v45, %v225
    %v227 = vlaneseq
    %v228 = vshrl.u32 %v227, 7
    %v229 = vsub.s32 4, %v228
    %v230 = vrot.slane %v46, %v229
    %v231 = vlaneseq
    %v232 = vshrl.u32 %v231, 7
    %v233 = vsub.s32 4, %v232
    %v234 = vrot.slane %v47, %v233
    %239 = vrot.lane.b32.xlu0 %v222, 18
    %v240 = vpop.permute.xlu0 %239
    %241 = vrot.lane.b32.xlu0 %v226, 18
    %v242 = vpop.permute.xlu0 %241
    %243 = vrot.lane.b32.xlu0 %v230, 18
    %v244 = vpop.permute.xlu0 %243
    %245 = vrot.lane.b32.xlu0 %v234, 18
    %v246 = vpop.permute.xlu0 %245
    %vm247 = vcmask 146432
    %v248 = vsel %vm247, %v240, %v242
    %v249 = vsel %vm247, %v242, %v244
    %v250 = vsel %vm247, %v244, %v246
    %v256 = vmul.f32 %v71, %v240
    %v257 = vmul.f32 %v63, %v248
    %v258 = vmul.f32 %v64, %v249
    %v259 = vmul.f32 %v65, %v250
    %v260 = vmul.f32 %v72, %v246
    %v261 = vlaneseq
    %v262 = vshrl.u32 %v261, 7
    %v263 = vsub.s32 5, %v262
    %v264 = vrot.slane %v44, %v263
    %v265 = vlaneseq
    %v266 = vshrl.u32 %v265, 7
    %v267 = vsub.s32 5, %v266
    %v268 = vrot.slane %v45, %v267
    %v269 = vlaneseq
    %v270 = vshrl.u32 %v269, 7
    %v271 = vsub.s32 5, %v270
    %v272 = vrot.slane %v46, %v271
    %v273 = vlaneseq
    %v274 = vshrl.u32 %v273, 7
    %v275 = vsub.s32 5, %v274
    %v276 = vrot.slane %v47, %v275
    %281 = vrot.lane.b32.xlu0 %v264, 32
    %v282 = vpop.permute.xlu0 %281
    %283 = vrot.lane.b32.xlu0 %v268, 32
    %v284 = vpop.permute.xlu0 %283
    %285 = vrot.lane.b32.xlu0 %v272, 32
    %v286 = vpop.permute.xlu0 %285
    %287 = vrot.lane.b32.xlu0 %v276, 32
    %v288 = vpop.permute.xlu0 %287
    %vm289 = vcmask 261120
    %v290 = vsel %vm289, %v282, %v284
    %v291 = vsel %vm289, %v284, %v286
    %v292 = vsel %vm289, %v286, %v288
    %v298 = vmul.f32 %v71, %v282
    %v299 = vmul.f32 %v63, %v290
    %v300 = vmul.f32 %v64, %v291
    %v301 = vmul.f32 %v65, %v292
    %v302 = vmul.f32 %v72, %v288
    %v303 = vlaneseq
    %v304 = vshrl.u32 %v303, 7
    %v305 = vsub.s32 6, %v304
    %v306 = vrot.slane %v44, %v305
    %v307 = vlaneseq
    %v308 = vshrl.u32 %v307, 7
    %v309 = vsub.s32 6, %v308
    %v310 = vrot.slane %v45, %v309
    %v311 = vlaneseq
    %v312 = vshrl.u32 %v311, 7
    %v313 = vsub.s32 6, %v312
    %v314 = vrot.slane %v46, %v313
    %v315 = vlaneseq
    %v316 = vshrl.u32 %v315, 7
    %v317 = vsub.s32 6, %v316
    %v318 = vrot.slane %v47, %v317
    %323 = vrot.lane.b32.xlu0 %v306, 33
    %v324 = vpop.permute.xlu0 %323
    %325 = vrot.lane.b32.xlu0 %v310, 33
    %v326 = vpop.permute.xlu0 %325
    %327 = vrot.lane.b32.xlu0 %v314, 33
    %v328 = vpop.permute.xlu0 %327
    %329 = vrot.lane.b32.xlu0 %v318, 33
    %v330 = vpop.permute.xlu0 %329
    %vm331 = vcmask 269312
    %v332 = vsel %vm331, %v324, %v326
    %v333 = vsel %vm331, %v326, %v328
    %v334 = vsel %vm331, %v328, %v330
    %v340 = vmul.f32 %v71, %v324
    %v341 = vmul.f32 %v63, %v332
    %v342 = vmul.f32 %v64, %v333
    %v343 = vmul.f32 %v65, %v334
    %v344 = vmul.f32 %v72, %v330
    %v345 = vlaneseq
    %v346 = vshrl.u32 %v345, 7
    %v347 = vsub.s32 7, %v346
    %v348 = vrot.slane %v44, %v347
    %v349 = vlaneseq
    %v350 = vshrl.u32 %v349, 7
    %v351 = vsub.s32 7, %v350
    %v352 = vrot.slane %v45, %v351
    %v353 = vlaneseq
    %v354 = vshrl.u32 %v353, 7
    %v355 = vsub.s32 7, %v354
    %v356 = vrot.slane %v46, %v355
    %v357 = vlaneseq
    %v358 = vshrl.u32 %v357, 7
    %v359 = vsub.s32 7, %v358
    %v360 = vrot.slane %v47, %v359
    %365 = vrot.lane.b32.xlu0 %v348, 34
    %v366 = vpop.permute.xlu0 %365
    %367 = vrot.lane.b32.xlu0 %v352, 34
    %v368 = vpop.permute.xlu0 %367
    %369 = vrot.lane.b32.xlu0 %v356, 34
    %v370 = vpop.permute.xlu0 %369
    %371 = vrot.lane.b32.xlu0 %v360, 34
    %v372 = vpop.permute.xlu0 %371
    %vm373 = vcmask 277504
    %v374 = vsel %vm373, %v366, %v368
    %v375 = vsel %vm373, %v368, %v370
    %v376 = vsel %vm373, %v370, %v372
    %v382 = vmul.f32 %v71, %v366
    %v383 = vmul.f32 %v63, %v374
    %v384 = vmul.f32 %v64, %v375
    %v385 = vmul.f32 %v65, %v376
    %v386 = vmul.f32 %v72, %v372
    %v392 = vrot.slane %v130, 4
    %v393 = vrot.slane %v131, 4
    %v394 = vrot.slane %v132, 4
    %v395 = vrot.slane %v133, 4
    %v396 = vrot.slane %v134, 4
    %397 = vrot.lane.b32.xlu0 %v392, 127
    %v398 = vpop.permute.xlu0 %397
    %399 = vrot.lane.b32.xlu0 %v393, 127
    %v400 = vpop.permute.xlu0 %399
    %401 = vrot.lane.b32.xlu0 %v394, 127
    %v402 = vpop.permute.xlu0 %401
    %403 = vrot.lane.b32.xlu0 %v395, 127
    %v404 = vpop.permute.xlu0 %403
    %405 = vrot.lane.b32.xlu0 %v396, 127
    %v406 = vpop.permute.xlu0 %405
    %vm407 = vcmask 1039360
    %v408 = vsel %vm407, %v398, %v400
    %v409 = vsel %vm407, %v400, %v402
    %v410 = vsel %vm407, %v402, %v404
    %v411 = vsel %vm407, %v404, %v406
    %421 = vrot.lane.b32.xlu0 %v172, 126
    %v422 = vpop.permute.xlu0 %421
    %423 = vrot.lane.b32.xlu0 %v173, 126
    %v424 = vpop.permute.xlu0 %423
    %425 = vrot.lane.b32.xlu0 %v174, 126
    %v426 = vpop.permute.xlu0 %425
    %427 = vrot.lane.b32.xlu0 %v175, 126
    %v428 = vpop.permute.xlu0 %427
    %429 = vrot.lane.b32.xlu0 %v176, 126
    %v430 = vpop.permute.xlu0 %429
    %vm431 = vcmask 1031168
    %v432 = vsel %vm431, %v422, %v424
    %v433 = vsel %vm431, %v424, %v426
    %v434 = vsel %vm431, %v426, %v428
    %v435 = vsel %vm431, %v428, %v430
    %v445 = vrot.slane %v214, 4
    %v446 = vrot.slane %v215, 4
    %v447 = vrot.slane %v216, 4
    %v448 = vrot.slane %v217, 4
    %v449 = vrot.slane %v218, 4
    %450 = vrot.lane.b32.xlu0 %v445, 112
    %v451 = vpop.permute.xlu0 %450
    %452 = vrot.lane.b32.xlu0 %v446, 112
    %v453 = vpop.permute.xlu0 %452
    %454 = vrot.lane.b32.xlu0 %v447, 112
    %v455 = vpop.permute.xlu0 %454
    %456 = vrot.lane.b32.xlu0 %v448, 112
    %v457 = vpop.permute.xlu0 %456
    %458 = vrot.lane.b32.xlu0 %v449, 112
    %v459 = vpop.permute.xlu0 %458
    %vm460 = vcmask 916480
    %v461 = vsel %vm460, %v451, %v453
    %v462 = vsel %vm460, %v453, %v455
    %v463 = vsel %vm460, %v455, %v457
    %v464 = vsel %vm460, %v457, %v459
    %v476 = vrot.slane %v256, 4
    %v477 = vrot.slane %v257, 4
    %v478 = vrot.slane %v258, 4
    %v479 = vrot.slane %v259, 4
    %v480 = vrot.slane %v260, 4
    %481 = vrot.lane.b32.xlu0 %v476, 110
    %v482 = vpop.permute.xlu0 %481
    %483 = vrot.lane.b32.xlu0 %v477, 110
    %v484 = vpop.permute.xlu0 %483
    %485 = vrot.lane.b32.xlu0 %v478, 110
    %v486 = vpop.permute.xlu0 %485
    %487 = vrot.lane.b32.xlu0 %v479, 110
    %v488 = vpop.permute.xlu0 %487
    %489 = vrot.lane.b32.xlu0 %v480, 110
    %v490 = vpop.permute.xlu0 %489
    %vm491 = vcmask 900096
    %v492 = vsel %vm491, %v482, %v484
    %v493 = vsel %vm491, %v484, %v486
    %v494 = vsel %vm491, %v486, %v488
    %v495 = vsel %vm491, %v488, %v490
    %505 = vrot.lane.b32.xlu0 %v298, 96
    %v506 = vpop.permute.xlu0 %505
    %507 = vrot.lane.b32.xlu0 %v299, 96
    %v508 = vpop.permute.xlu0 %507
    %509 = vrot.lane.b32.xlu0 %v300, 96
    %v510 = vpop.permute.xlu0 %509
    %511 = vrot.lane.b32.xlu0 %v301, 96
    %v512 = vpop.permute.xlu0 %511
    %513 = vrot.lane.b32.xlu0 %v302, 96
    %v514 = vpop.permute.xlu0 %513
    %vm515 = vcmask 785408
    %v516 = vsel %vm515, %v506, %v508
    %v517 = vsel %vm515, %v508, %v510
    %v518 = vsel %vm515, %v510, %v512
    %v519 = vsel %vm515, %v512, %v514
    %v529 = vrot.slane %v340, 4
    %v530 = vrot.slane %v341, 4
    %v531 = vrot.slane %v342, 4
    %v532 = vrot.slane %v343, 4
    %v533 = vrot.slane %v344, 4
    %534 = vrot.lane.b32.xlu0 %v529, 95
    %v535 = vpop.permute.xlu0 %534
    %536 = vrot.lane.b32.xlu0 %v530, 95
    %v537 = vpop.permute.xlu0 %536
    %538 = vrot.lane.b32.xlu0 %v531, 95
    %v539 = vpop.permute.xlu0 %538
    %540 = vrot.lane.b32.xlu0 %v532, 95
    %v541 = vpop.permute.xlu0 %540
    %542 = vrot.lane.b32.xlu0 %v533, 95
    %v543 = vpop.permute.xlu0 %542
    %vm544 = vcmask 777216
    %v545 = vsel %vm544, %v535, %v537
    %v546 = vsel %vm544, %v537, %v539
    %v547 = vsel %vm544, %v539, %v541
    %v548 = vsel %vm544, %v541, %v543
    %558 = vrot.lane.b32.xlu0 %v382, 94
    %v559 = vpop.permute.xlu0 %558
    %560 = vrot.lane.b32.xlu0 %v383, 94
    %v561 = vpop.permute.xlu0 %560
    %562 = vrot.lane.b32.xlu0 %v384, 94
    %v563 = vpop.permute.xlu0 %562
    %564 = vrot.lane.b32.xlu0 %v385, 94
    %v565 = vpop.permute.xlu0 %564
    %566 = vrot.lane.b32.xlu0 %v386, 94
    %v567 = vpop.permute.xlu0 %566
    %vm568 = vcmask 769024
    %v569 = vsel %vm568, %v559, %v561
    %v570 = vsel %vm568, %v561, %v563
    %v571 = vsel %vm568, %v563, %v565
    %v572 = vsel %vm568, %v565, %v567
    %vm573 = vcmask 1043456
    %v574 = vsel %vm573, %v89, %v408
    %v575 = vsel %vm573, %v90, %v409
    %v576 = vsel %vm573, %v91, %v410
    %v577 = vsel %vm573, %v92, %v411
    %v578 = vsel %vm573, %v432, %v461
    %v579 = vsel %vm573, %v433, %v462
    %v580 = vsel %vm573, %v434, %v463
    %v581 = vsel %vm573, %v435, %v464
    %v582 = vsel %vm573, %v42, %v492
    %v583 = vsel %vm573, %v52, %v493
    %v584 = vsel %vm573, %v43, %v494
    %v585 = vsel %vm573, %v53, %v495
    %v586 = vsel %vm573, %v516, %v545
    %v587 = vsel %vm573, %v517, %v546
    %v588 = vsel %vm573, %v518, %v547
    %v589 = vsel %vm573, %v519, %v548
    %v590 = vld [vmem:[%s2] sm:$0xff]
    %vm591 = vcmask 293888
    %v593 = vsel %vm591, %v590, 0
    %v595 = vsel %vm573, %v569, 0
    %v597 = vsel %vm573, %v570, 0
    %v599 = vsel %vm573, %v571, 0
    %v601 = vsel %vm573, %v572, 0
    %603 = vmatprep.subr.mxu0 0.0
    %604 = vmatpush1.msra.mxu0 0.0
    %605 = vmatprep.subr.mxu0 0.0
    %606 = vmatpush1.msra.mxu0 0.0
    %607 = vmatprep.subr.mxu0 0.0
    %608 = vmatpush1.msra.mxu0 0.0
    %609 = vmatprep.subr.mxu0 0.0
    %610 = vmatpush1.msra.mxu0 0.0
    %611 = vmatprep.subr.mxu0 0.0
    %612 = vmatpush1.msra.mxu0 0.0
    %613 = vmatprep.subr.mxu0 0.0
    %614 = vmatpush1.msra.mxu0 0.0
    %615 = vmatprep.subr.mxu0 0.0
    %616 = vmatpush1.msra.mxu0 0.0
    %617 = vmatprep.subr.mxu0 0.0
    %618 = vmatpush1.msra.mxu0 0.0
    %619 = vmatprep.subr.mxu0 0.0
    %620 = vmatpush1.msra.mxu0 0.0
    %621 = vmatprep.subr.mxu0 0.0
    %622 = vmatpush1.msra.mxu0 0.0
    %623 = vmatprep.subr.mxu0 0.0
    %624 = vmatpush1.msra.mxu0 0.0
    %625 = vmatprep.subr.mxu0 %v597
    %626 = vmatpush1.msra.mxu0 %v595
    %627 = vmatprep.subr.mxu0 %v587
    %628 = vmatpush1.msra.mxu0 %v586
    %629 = vmatprep.subr.mxu0 %v583
    %630 = vmatpush1.msra.mxu0 %v582
    %631 = vmatprep.subr.mxu0 %v579
    %632 = vmatpush1.msra.mxu0 %v578
    %633 = vmatprep.subr.mxu0 %v575
    %634 = vmatpush1.msra.mxu0 %v574
    %635 = vmatprep.subr.mxu0 0.0
    %636 = vmatpush2.msra.mxu0 0.0
    %637 = vmatprep.subr.mxu0 0.0
    %638 = vmatpush2.msra.mxu0 0.0
    %639 = vmatprep.subr.mxu0 0.0
    %640 = vmatpush2.msra.mxu0 0.0
    %641 = vmatprep.subr.mxu0 0.0
    %642 = vmatpush2.msra.mxu0 0.0
    %643 = vmatprep.subr.mxu0 0.0
    %644 = vmatpush2.msra.mxu0 0.0
    %645 = vmatprep.subr.mxu0 0.0
    %646 = vmatpush2.msra.mxu0 0.0
    %647 = vmatprep.subr.mxu0 0.0
    %648 = vmatpush2.msra.mxu0 0.0
    %649 = vmatprep.subr.mxu0 0.0
    %650 = vmatpush2.msra.mxu0 0.0
    %651 = vmatprep.subr.mxu0 0.0
    %652 = vmatpush2.msra.mxu0 0.0
    %653 = vmatprep.subr.mxu0 0.0
    %654 = vmatpush2.msra.mxu0 0.0
    %655 = vmatprep.subr.mxu0 0.0
    %656 = vmatpush2.msra.mxu0 0.0
    %657 = vmatprep.subr.mxu0 0.0
    %658 = vmatpush2.msra.mxu0 0.0
    %659 = vmatprep.subr.mxu0 0.0
    %660 = vmatpush2.msra.mxu0 0.0
    %661 = vmatprep.subr.mxu0 0.0
    %662 = vmatpush2.msra.mxu0 0.0
    %663 = vmatprep.subr.mxu0 0.0
    %664 = vmatpush2.msra.mxu0 0.0
    %665 = vmatprep.subr.mxu0 0.0
    %666 = vmatpush2.msra.mxu0 0.0
    %667 = vmatprep.mubr.f32.mxu0 0.0
    %668 = vmatmul.mubr.f32.gmra.mxu0 %v593
    %v669 = vpop.f32.mrf.mxu0
    %v670 = vadd.f32 0.0, %v669
    %v671 = vpop.f32.mrf.mxu0
    %v672 = vadd.f32 0.0, %v671
    %673 = vdwg.mxu0
    %674 = vmatprep.subr.mxu0 0.0
    %675 = vmatpush1.msra.mxu0 0.0
    %676 = vmatprep.subr.mxu0 0.0
    %677 = vmatpush1.msra.mxu0 0.0
    %678 = vmatprep.subr.mxu0 0.0
    %679 = vmatpush1.msra.mxu0 0.0
    %680 = vmatprep.subr.mxu0 0.0
    %681 = vmatpush1.msra.mxu0 0.0
    %682 = vmatprep.subr.mxu0 0.0
    %683 = vmatpush1.msra.mxu0 0.0
    %684 = vmatprep.subr.mxu0 0.0
    %685 = vmatpush1.msra.mxu0 0.0
    %686 = vmatprep.subr.mxu0 0.0
    %687 = vmatpush1.msra.mxu0 0.0
    %688 = vmatprep.subr.mxu0 0.0
    %689 = vmatpush1.msra.mxu0 0.0
    %690 = vmatprep.subr.mxu0 0.0
    %691 = vmatpush1.msra.mxu0 0.0
    %692 = vmatprep.subr.mxu0 0.0
    %693 = vmatpush1.msra.mxu0 0.0
    %694 = vmatprep.subr.mxu0 0.0
    %695 = vmatpush1.msra.mxu0 0.0
    %696 = vmatprep.subr.mxu0 %v601
    %697 = vmatpush1.msra.mxu0 %v599
    %698 = vmatprep.subr.mxu0 %v589
    %699 = vmatpush1.msra.mxu0 %v588
    %700 = vmatprep.subr.mxu0 %v585
    %701 = vmatpush1.msra.mxu0 %v584
    %702 = vmatprep.subr.mxu0 %v581
    %703 = vmatpush1.msra.mxu0 %v580
    %704 = vmatprep.subr.mxu0 %v577
    %705 = vmatpush1.msra.mxu0 %v576
    %706 = vmatprep.subr.mxu0 0.0
    %707 = vmatpush2.msra.mxu0 0.0
    %708 = vmatprep.subr.mxu0 0.0
    %709 = vmatpush2.msra.mxu0 0.0
    %710 = vmatprep.subr.mxu0 0.0
    %711 = vmatpush2.msra.mxu0 0.0
    %712 = vmatprep.subr.mxu0 0.0
    %713 = vmatpush2.msra.mxu0 0.0
    %714 = vmatprep.subr.mxu0 0.0
    %715 = vmatpush2.msra.mxu0 0.0
    %716 = vmatprep.subr.mxu0 0.0
    %717 = vmatpush2.msra.mxu0 0.0
    %718 = vmatprep.subr.mxu0 0.0
    %719 = vmatpush2.msra.mxu0 0.0
    %720 = vmatprep.subr.mxu0 0.0
    %721 = vmatpush2.msra.mxu0 0.0
    %722 = vmatprep.subr.mxu0 0.0
    %723 = vmatpush2.msra.mxu0 0.0
    %724 = vmatprep.subr.mxu0 0.0
    %725 = vmatpush2.msra.mxu0 0.0
    %726 = vmatprep.subr.mxu0 0.0
    %727 = vmatpush2.msra.mxu0 0.0
    %728 = vmatprep.subr.mxu0 0.0
    %729 = vmatpush2.msra.mxu0 0.0
    %730 = vmatprep.subr.mxu0 0.0
    %731 = vmatpush2.msra.mxu0 0.0
    %732 = vmatprep.subr.mxu0 0.0
    %733 = vmatpush2.msra.mxu0 0.0
    %734 = vmatprep.subr.mxu0 0.0
    %735 = vmatpush2.msra.mxu0 0.0
    %736 = vmatprep.subr.mxu0 0.0
    %737 = vmatpush2.msra.mxu0 0.0
    %738 = vmatprep.mubr.f32.mxu0 0.0
    %739 = vmatmul.mubr.f32.gmra.mxu0 %v593
    %v740 = vpop.f32.mrf.mxu0
    %v741 = vadd.f32 0.0, %v740
    %v742 = vpop.f32.mrf.mxu0
    %v743 = vadd.f32 0.0, %v742
    %744 = vdwg.mxu0
    %v745 = vadd.f32 %v670, %v672
    %v746 = vadd.f32 %v745, %v741
    %v747 = vadd.f32 %v746, %v743
    %748 = vadd.xlane.f32.xlu0 %v747
    %v749 = vpop.xlane.xlu0 %748
    %v750 = vmul.f32 %v670, %v670
    %v751 = vmul.f32 %v672, %v672
    %v752 = vmul.f32 %v741, %v741
    %v753 = vmul.f32 %v743, %v743
    %v754 = vadd.f32 %v750, %v751
    %v755 = vadd.f32 %v754, %v752
    %v756 = vadd.f32 %v755, %v753
    %757 = vadd.xlane.f32.xlu0 %v756
    %v758 = vpop.xlane.xlu0 %757
    %v759 = vmul.f32 %v749, 0.001953125
    %v760 = vmul.f32 %v758, 0.001953125
    %v761 = vmul.f32 %v759, %v759
    %v762 = vsub.f32 %v760, %v761
    %v763 = vmax.f32 %v762, 0.0
    %v764 = vadd.f32 %v763, 1e-05
    %v765 = vrsqrt.pop %v764
    %v766 = vmul.f32 %v48, %v765
    %v767 = vmul.f32 %v759, %v766
    %v768 = vsub.f32 %v49, %v767
    %770 = vset.pattern.permute.xlu0 0
    %771 = vperm.xlu0 %770, %v766
    %v772 = vpop.permute.xlu0 %771
    %v774 = vmul.f32 %v670, %v772
    %v775 = vmul.f32 %v672, %v772
    %v776 = vmul.f32 %v741, %v772
    %v777 = vmul.f32 %v743, %v772
    %779 = vset.pattern.permute.xlu0 0
    %780 = vperm.xlu0 %779, %v768
    %v781 = vpop.permute.xlu0 %780
    %v783 = vadd.f32 %v774, %v781
    %v784 = vadd.f32 %v775, %v781
    %v785 = vadd.f32 %v776, %v781
    %v786 = vadd.f32 %v777, %v781
    %v787 = vmax.f32 %v783, 0.0
    %v788 = vmax.f32 %v784, 0.0
    %v789 = vmax.f32 %v785, 0.0
    %v790 = vmax.f32 %v786, 0.0
    %v791 = vld [vmem:[%s6] sm:$0xf]
    %v792 = vld [vmem:[%s7] sm:$0xf]
    %797 = vrot.lane.b32.xlu0 %v787, 17
    %v798 = vpop.permute.xlu0 %797
    %799 = vrot.lane.b32.xlu0 %v788, 17
    %v800 = vpop.permute.xlu0 %799
    %801 = vrot.lane.b32.xlu0 %v789, 17
    %v802 = vpop.permute.xlu0 %801
    %803 = vrot.lane.b32.xlu0 %v790, 17
    %v804 = vpop.permute.xlu0 %803
    %v805 = vsel %vm62, %v798, %v800
    %v806 = vsel %vm62, %v800, %v802
    %v807 = vsel %vm62, %v802, %v804
    %v813 = vsel %vm62, 0.0, %v798
    %v814 = vsel %vm62, %v804, 0.0
    %v815 = vmul.f32 %v813, %v76
    %v816 = vmul.f32 %v805, %v80
    %v817 = vmul.f32 %v806, %v84
    %v818 = vmul.f32 %v807, %v88
    %v819 = vmul.f32 %v813, %v114
    %v820 = vmul.f32 %v805, %v122
    %v821 = vmul.f32 %v806, %v123
    %v822 = vmul.f32 %v807, %v124
    %v823 = vmul.f32 %v814, %v120
    %v824 = vmul.f32 %v813, %v156
    %v825 = vmul.f32 %v805, %v164
    %v826 = vmul.f32 %v806, %v165
    %v827 = vmul.f32 %v807, %v166
    %v828 = vmul.f32 %v814, %v162
    %v829 = vmul.f32 %v813, %v198
    %v830 = vmul.f32 %v805, %v206
    %v831 = vmul.f32 %v806, %v207
    %v832 = vmul.f32 %v807, %v208
    %v833 = vmul.f32 %v814, %v204
    %v834 = vmul.f32 %v813, %v240
    %v835 = vmul.f32 %v805, %v248
    %v836 = vmul.f32 %v806, %v249
    %v837 = vmul.f32 %v807, %v250
    %v838 = vmul.f32 %v814, %v246
    %v839 = vmul.f32 %v813, %v282
    %v840 = vmul.f32 %v805, %v290
    %v841 = vmul.f32 %v806, %v291
    %v842 = vmul.f32 %v807, %v292
    %v843 = vmul.f32 %v814, %v288
    %v844 = vmul.f32 %v813, %v324
    %v845 = vmul.f32 %v805, %v332
    %v846 = vmul.f32 %v806, %v333
    %v847 = vmul.f32 %v807, %v334
    %v848 = vmul.f32 %v814, %v330
    %v849 = vmul.f32 %v813, %v366
    %v850 = vmul.f32 %v805, %v374
    %v851 = vmul.f32 %v806, %v375
    %v852 = vmul.f32 %v807, %v376
    %v853 = vmul.f32 %v814, %v372
    %859 = vrot.lane.b32.xlu0 %v819, 127
    %v860 = vpop.permute.xlu0 %859
    %861 = vrot.lane.b32.xlu0 %v820, 127
    %v862 = vpop.permute.xlu0 %861
    %863 = vrot.lane.b32.xlu0 %v821, 127
    %v864 = vpop.permute.xlu0 %863
    %865 = vrot.lane.b32.xlu0 %v822, 127
    %v866 = vpop.permute.xlu0 %865
    %867 = vrot.lane.b32.xlu0 %v823, 127
    %v868 = vpop.permute.xlu0 %867
    %v869 = vsel %vm407, %v860, %v862
    %v870 = vsel %vm407, %v862, %v864
    %v871 = vsel %vm407, %v864, %v866
    %v872 = vsel %vm407, %v866, %v868
    %882 = vrot.lane.b32.xlu0 %v824, 126
    %v883 = vpop.permute.xlu0 %882
    %884 = vrot.lane.b32.xlu0 %v825, 126
    %v885 = vpop.permute.xlu0 %884
    %886 = vrot.lane.b32.xlu0 %v826, 126
    %v887 = vpop.permute.xlu0 %886
    %888 = vrot.lane.b32.xlu0 %v827, 126
    %v889 = vpop.permute.xlu0 %888
    %890 = vrot.lane.b32.xlu0 %v828, 126
    %v891 = vpop.permute.xlu0 %890
    %v892 = vsel %vm431, %v883, %v885
    %v893 = vsel %vm431, %v885, %v887
    %v894 = vsel %vm431, %v887, %v889
    %v895 = vsel %vm431, %v889, %v891
    %905 = vrot.lane.b32.xlu0 %v829, 112
    %v906 = vpop.permute.xlu0 %905
    %907 = vrot.lane.b32.xlu0 %v830, 112
    %v908 = vpop.permute.xlu0 %907
    %909 = vrot.lane.b32.xlu0 %v831, 112
    %v910 = vpop.permute.xlu0 %909
    %911 = vrot.lane.b32.xlu0 %v832, 112
    %v912 = vpop.permute.xlu0 %911
    %913 = vrot.lane.b32.xlu0 %v833, 112
    %v914 = vpop.permute.xlu0 %913
    %v915 = vsel %vm460, %v906, %v908
    %v916 = vsel %vm460, %v908, %v910
    %v917 = vsel %vm460, %v910, %v912
    %v918 = vsel %vm460, %v912, %v914
    %928 = vrot.lane.b32.xlu0 %v834, 110
    %v929 = vpop.permute.xlu0 %928
    %930 = vrot.lane.b32.xlu0 %v835, 110
    %v931 = vpop.permute.xlu0 %930
    %932 = vrot.lane.b32.xlu0 %v836, 110
    %v933 = vpop.permute.xlu0 %932
    %934 = vrot.lane.b32.xlu0 %v837, 110
    %v935 = vpop.permute.xlu0 %934
    %936 = vrot.lane.b32.xlu0 %v838, 110
    %v937 = vpop.permute.xlu0 %936
    %v938 = vsel %vm491, %v929, %v931
    %v939 = vsel %vm491, %v931, %v933
    %v940 = vsel %vm491, %v933, %v935
    %v941 = vsel %vm491, %v935, %v937
    %951 = vrot.lane.b32.xlu0 %v839, 96
    %v952 = vpop.permute.xlu0 %951
    %953 = vrot.lane.b32.xlu0 %v840, 96
    %v954 = vpop.permute.xlu0 %953
    %955 = vrot.lane.b32.xlu0 %v841, 96
    %v956 = vpop.permute.xlu0 %955
    %957 = vrot.lane.b32.xlu0 %v842, 96
    %v958 = vpop.permute.xlu0 %957
    %959 = vrot.lane.b32.xlu0 %v843, 96
    %v960 = vpop.permute.xlu0 %959
    %v961 = vsel %vm515, %v952, %v954
    %v962 = vsel %vm515, %v954, %v956
    %v963 = vsel %vm515, %v956, %v958
    %v964 = vsel %vm515, %v958, %v960
    %974 = vrot.lane.b32.xlu0 %v844, 95
    %v975 = vpop.permute.xlu0 %974
    %976 = vrot.lane.b32.xlu0 %v845, 95
    %v977 = vpop.permute.xlu0 %976
    %978 = vrot.lane.b32.xlu0 %v846, 95
    %v979 = vpop.permute.xlu0 %978
    %980 = vrot.lane.b32.xlu0 %v847, 95
    %v981 = vpop.permute.xlu0 %980
    %982 = vrot.lane.b32.xlu0 %v848, 95
    %v983 = vpop.permute.xlu0 %982
    %v984 = vsel %vm544, %v975, %v977
    %v985 = vsel %vm544, %v977, %v979
    %v986 = vsel %vm544, %v979, %v981
    %v987 = vsel %vm544, %v981, %v983
    %997 = vrot.lane.b32.xlu0 %v849, 94
    %v998 = vpop.permute.xlu0 %997
    %999 = vrot.lane.b32.xlu0 %v850, 94
    %v1000 = vpop.permute.xlu0 %999
    %1001 = vrot.lane.b32.xlu0 %v851, 94
    %v1002 = vpop.permute.xlu0 %1001
    %1003 = vrot.lane.b32.xlu0 %v852, 94
    %v1004 = vpop.permute.xlu0 %1003
    %1005 = vrot.lane.b32.xlu0 %v853, 94
    %v1006 = vpop.permute.xlu0 %1005
    %v1007 = vsel %vm568, %v998, %v1000
    %v1008 = vsel %vm568, %v1000, %v1002
    %v1009 = vsel %vm568, %v1002, %v1004
    %v1010 = vsel %vm568, %v1004, %v1006
    %v1015 = vld [vmem:[%s5] sm:$0xf]
    %vm1016 = vcmask 588800
    %v1018 = vsel %vm1016, %v1015, 0
    %1020 = vmatprep.subr.mxu0 0.0
    %1021 = vmatpush1.msra.mxu0 0.0
    %1022 = vmatprep.subr.mxu0 0.0
    %1023 = vmatpush1.msra.mxu0 0.0
    %1024 = vmatprep.subr.mxu0 0.0
    %1025 = vmatpush1.msra.mxu0 0.0
    %1026 = vmatprep.subr.mxu0 0.0
    %1027 = vmatpush1.msra.mxu0 0.0
    %1028 = vmatprep.subr.mxu0 0.0
    %1029 = vmatpush1.msra.mxu0 0.0
    %1030 = vmatprep.subr.mxu0 0.0
    %1031 = vmatpush1.msra.mxu0 0.0
    %1032 = vmatprep.subr.mxu0 0.0
    %1033 = vmatpush1.msra.mxu0 0.0
    %1034 = vmatprep.subr.mxu0 %v1008
    %1035 = vmatpush1.msra.mxu0 %v1007
    %1036 = vmatprep.subr.mxu0 %v985
    %1037 = vmatpush1.msra.mxu0 %v984
    %1038 = vmatprep.subr.mxu0 %v962
    %1039 = vmatpush1.msra.mxu0 %v961
    %1040 = vmatprep.subr.mxu0 %v939
    %1041 = vmatpush1.msra.mxu0 %v938
    %1042 = vmatprep.subr.mxu0 %v788
    %1043 = vmatpush1.msra.mxu0 %v787
    %1044 = vmatprep.subr.mxu0 %v916
    %1045 = vmatpush1.msra.mxu0 %v915
    %1046 = vmatprep.subr.mxu0 %v893
    %1047 = vmatpush1.msra.mxu0 %v892
    %1048 = vmatprep.subr.mxu0 %v870
    %1049 = vmatpush1.msra.mxu0 %v869
    %1050 = vmatprep.subr.mxu0 %v816
    %1051 = vmatpush1.msra.mxu0 %v815
    %1052 = vmatprep.subr.mxu0 0.0
    %1053 = vmatpush2.msra.mxu0 0.0
    %1054 = vmatprep.subr.mxu0 0.0
    %1055 = vmatpush2.msra.mxu0 0.0
    %1056 = vmatprep.subr.mxu0 0.0
    %1057 = vmatpush2.msra.mxu0 0.0
    %1058 = vmatprep.subr.mxu0 0.0
    %1059 = vmatpush2.msra.mxu0 0.0
    %1060 = vmatprep.subr.mxu0 0.0
    %1061 = vmatpush2.msra.mxu0 0.0
    %1062 = vmatprep.subr.mxu0 0.0
    %1063 = vmatpush2.msra.mxu0 0.0
    %1064 = vmatprep.subr.mxu0 0.0
    %1065 = vmatpush2.msra.mxu0 0.0
    %1066 = vmatprep.subr.mxu0 0.0
    %1067 = vmatpush2.msra.mxu0 0.0
    %1068 = vmatprep.subr.mxu0 0.0
    %1069 = vmatpush2.msra.mxu0 0.0
    %1070 = vmatprep.subr.mxu0 0.0
    %1071 = vmatpush2.msra.mxu0 0.0
    %1072 = vmatprep.subr.mxu0 0.0
    %1073 = vmatpush2.msra.mxu0 0.0
    %1074 = vmatprep.subr.mxu0 0.0
    %1075 = vmatpush2.msra.mxu0 0.0
    %1076 = vmatprep.subr.mxu0 0.0
    %1077 = vmatpush2.msra.mxu0 0.0
    %1078 = vmatprep.subr.mxu0 0.0
    %1079 = vmatpush2.msra.mxu0 0.0
    %1080 = vmatprep.subr.mxu0 0.0
    %1081 = vmatpush2.msra.mxu0 0.0
    %1082 = vmatprep.subr.mxu0 0.0
    %1083 = vmatpush2.msra.mxu0 0.0
    %1084 = vmatprep.mubr.f32.mxu0 0.0
    %1085 = vmatmul.mubr.f32.gmra.mxu0 %v1018
    %v1086 = vpop.f32.mrf.mxu0
    %v1087 = vadd.f32 0.0, %v1086
    %v1088 = vpop.f32.mrf.mxu0
    %v1089 = vadd.f32 0.0, %v1088
    %1090 = vdwg.mxu0
    %1091 = vmatprep.subr.mxu0 0.0
    %1092 = vmatpush1.msra.mxu0 0.0
    %1093 = vmatprep.subr.mxu0 0.0
    %1094 = vmatpush1.msra.mxu0 0.0
    %1095 = vmatprep.subr.mxu0 0.0
    %1096 = vmatpush1.msra.mxu0 0.0
    %1097 = vmatprep.subr.mxu0 0.0
    %1098 = vmatpush1.msra.mxu0 0.0
    %1099 = vmatprep.subr.mxu0 0.0
    %1100 = vmatpush1.msra.mxu0 0.0
    %1101 = vmatprep.subr.mxu0 0.0
    %1102 = vmatpush1.msra.mxu0 0.0
    %1103 = vmatprep.subr.mxu0 0.0
    %1104 = vmatpush1.msra.mxu0 0.0
    %1105 = vmatprep.subr.mxu0 %v1010
    %1106 = vmatpush1.msra.mxu0 %v1009
    %1107 = vmatprep.subr.mxu0 %v987
    %1108 = vmatpush1.msra.mxu0 %v986
    %1109 = vmatprep.subr.mxu0 %v964
    %1110 = vmatpush1.msra.mxu0 %v963
    %1111 = vmatprep.subr.mxu0 %v941
    %1112 = vmatpush1.msra.mxu0 %v940
    %1113 = vmatprep.subr.mxu0 %v790
    %1114 = vmatpush1.msra.mxu0 %v789
    %1115 = vmatprep.subr.mxu0 %v918
    %1116 = vmatpush1.msra.mxu0 %v917
    %1117 = vmatprep.subr.mxu0 %v895
    %1118 = vmatpush1.msra.mxu0 %v894
    %1119 = vmatprep.subr.mxu0 %v872
    %1120 = vmatpush1.msra.mxu0 %v871
    %1121 = vmatprep.subr.mxu0 %v818
    %1122 = vmatpush1.msra.mxu0 %v817
    %1123 = vmatprep.subr.mxu0 0.0
    %1124 = vmatpush2.msra.mxu0 0.0
    %1125 = vmatprep.subr.mxu0 0.0
    %1126 = vmatpush2.msra.mxu0 0.0
    %1127 = vmatprep.subr.mxu0 0.0
    %1128 = vmatpush2.msra.mxu0 0.0
    %1129 = vmatprep.subr.mxu0 0.0
    %1130 = vmatpush2.msra.mxu0 0.0
    %1131 = vmatprep.subr.mxu0 0.0
    %1132 = vmatpush2.msra.mxu0 0.0
    %1133 = vmatprep.subr.mxu0 0.0
    %1134 = vmatpush2.msra.mxu0 0.0
    %1135 = vmatprep.subr.mxu0 0.0
    %1136 = vmatpush2.msra.mxu0 0.0
    %1137 = vmatprep.subr.mxu0 0.0
    %1138 = vmatpush2.msra.mxu0 0.0
    %1139 = vmatprep.subr.mxu0 0.0
    %1140 = vmatpush2.msra.mxu0 0.0
    %1141 = vmatprep.subr.mxu0 0.0
    %1142 = vmatpush2.msra.mxu0 0.0
    %1143 = vmatprep.subr.mxu0 0.0
    %1144 = vmatpush2.msra.mxu0 0.0
    %1145 = vmatprep.subr.mxu0 0.0
    %1146 = vmatpush2.msra.mxu0 0.0
    %1147 = vmatprep.subr.mxu0 0.0
    %1148 = vmatpush2.msra.mxu0 0.0
    %1149 = vmatprep.subr.mxu0 0.0
    %1150 = vmatpush2.msra.mxu0 0.0
    %1151 = vmatprep.subr.mxu0 0.0
    %1152 = vmatpush2.msra.mxu0 0.0
    %1153 = vmatprep.subr.mxu0 0.0
    %1154 = vmatpush2.msra.mxu0 0.0
    %1155 = vmatprep.mubr.f32.mxu0 0.0
    %1156 = vmatmul.mubr.f32.gmra.mxu0 %v1018
    %v1157 = vpop.f32.mrf.mxu0
    %v1158 = vadd.f32 0.0, %v1157
    %v1159 = vpop.f32.mrf.mxu0
    %v1160 = vadd.f32 0.0, %v1159
    %1161 = vdwg.mxu0
    %v1162 = vsel %vm573, %v1087, 0.0
    %v1163 = vsel %vm573, %v1089, 0.0
    %v1164 = vadd.f32 %v1162, %v1163
    %v1165 = vsel %vm573, %v1158, 0.0
    %v1166 = vadd.f32 %v1164, %v1165
    %v1167 = vsel %vm573, %v1160, 0.0
    %v1168 = vadd.f32 %v1166, %v1167
    %1169 = vadd.xlane.f32.xlu0 %v1168
    %v1170 = vpop.xlane.xlu0 %1169
    %v1171 = vmul.f32 %v1087, %v1087
    %v1172 = vmul.f32 %v1089, %v1089
    %v1173 = vmul.f32 %v1158, %v1158
    %v1174 = vmul.f32 %v1160, %v1160
    %v1175 = vsel %vm573, %v1171, 0.0
    %v1176 = vsel %vm573, %v1172, 0.0
    %v1177 = vadd.f32 %v1175, %v1176
    %v1178 = vsel %vm573, %v1173, 0.0
    %v1179 = vadd.f32 %v1177, %v1178
    %v1180 = vsel %vm573, %v1174, 0.0
    %v1181 = vadd.f32 %v1179, %v1180
    %1182 = vadd.xlane.f32.xlu0 %v1181
    %v1183 = vpop.xlane.xlu0 %1182
    %v1184 = vmul.f32 %v1170, 0.001953125
    %v1185 = vmul.f32 %v1183, 0.001953125
    %v1186 = vmul.f32 %v1184, %v1184
    %v1187 = vsub.f32 %v1185, %v1186
    %v1188 = vmax.f32 %v1187, 0.0
    %v1189 = vadd.f32 %v1188, 1e-05
    %v1190 = vrsqrt.pop %v1189
    %v1191 = vmul.f32 %v791, %v1190
    %v1192 = vmul.f32 %v1184, %v1191
    %v1193 = vsub.f32 %v792, %v1192
    %1195 = vset.pattern.permute.xlu0 0
    %1196 = vperm.xlu0 %1195, %v1191
    %v1197 = vpop.permute.xlu0 %1196
    %v1199 = vmul.f32 %v1087, %v1197
    %v1200 = vmul.f32 %v1089, %v1197
    %v1201 = vmul.f32 %v1158, %v1197
    %v1202 = vmul.f32 %v1160, %v1197
    %1204 = vset.pattern.permute.xlu0 0
    %1205 = vperm.xlu0 %1204, %v1193
    %v1206 = vpop.permute.xlu0 %1205
    %v1208 = vadd.f32 %v1199, %v1206
    %v1209 = vadd.f32 %v1200, %v1206
    %v1210 = vadd.f32 %v1201, %v1206
    %v1211 = vadd.f32 %v1202, %v1206
    %v1212 = vmax.f32 %v1208, 0.0
    %v1213 = vmax.f32 %v1209, 0.0
    %v1214 = vmax.f32 %v1210, 0.0
    %v1215 = vmax.f32 %v1211, 0.0
    %v1220 = vcombine.low %v1212, %v1213
    %v1221 = vcombine.low %v1214, %v1215
    %1224 = vst [vmem:[#allocation5] sm:$0xff] %v1220
    %1225 = vst [vmem:[#allocation5 + $0x8] sm:$0xff] %v1221
    // Predicated region
    $region38: #{tpu_custom_call.1} parent=1 // pred_check
      _
    $region39: #{tpu_custom_call.1} parent=1 // pred_check_branch
      %1227 = sbr.rel (0) target = $region41
    $region40: #{tpu_custom_call.1} parent=1 // pred_region
      %s1229 = ssub.s32 256, 256
      %1230 = vsyncadd [#allocation4], %s1229
      %s1232 = sshll.u32 [#allocation5], 4
      %s1233 = int_to_ptr.vmem [resolvable:$true] %s1232
      %1235 = dma.vmem_to_hbm [thread:$0]  %s1233, 256, %s8, [#allocation4]
    $region41: #{tpu_custom_call.1} parent=1 // pred_fallthru
      _
    // Predicated region
    $region42: #{tpu_custom_call.1} parent=1 // pred_check
      _
    $region43: #{tpu_custom_call.1} parent=1 // pred_check_branch
      %1237 = sbr.rel (0) target = $region45
    $region44: #{tpu_custom_call.1} parent=1 // pred_region
      %1238 = dma.done [#allocation4], 256
    $region45: #{tpu_custom_call.1} parent=1 // pred_fallthru
      _
    %1239 = vsyncpa [#allocation3], 1
    %1240 = vsyncpa [#allocation4], 1

</llo_original>
